<compile_context>
chip_gen: v7x
topology: tpu7x:2x2x1
jax: 0.10.0
libtpu: 0.0.40
codegen_flags: <defaults>
</compile_context>

<pallas_src>
import jax
import jax.numpy as jnp
from jax.experimental import pallas as pl
from jax.experimental.pallas import tpu as pltpu


# ----------------------------------------------------------------------------
# Small host-side helpers
# ----------------------------------------------------------------------------
def _cdiv(a, b):
    return -(-a // b)


def _round_up(v, m):
    return _cdiv(v, m) * m


def _vmem_budget_bytes():
    """Generation-aware total-VMEM budget for this kernel."""
    try:
        cap = int(pltpu.get_tpu_info().vmem_capacity_bytes)
    except Exception:
        cap = 64 << 20  # conservative (v7x-sized) fallback
    # ~40 MiB on 64-MiB parts (v7x), ~64 MiB on 128-MiB parts (v5e/v6e).
    return (40 << 20) if cap <= (64 << 20) else (64 << 20)


def _sample_rc(N):
    """Factor N = R * C with C a multiple of 128 (lane dense), preferring R >= 8."""
    if N % 128 != 0:
        return None
    k = N // 128
    if k <= 8:
        return (k, 128)
    g = 1
    limit = k // 8
    for cand in range(1, limit + 1):
        if k % cand == 0:
            g = cand
    return (k // g, 128 * g)


def _small_batch_fold(B, N, sub):
    """Rows-per-sample fold so small batches still fill sublanes densely."""
    if B >= sub:
        return 1
    for f in range(2, 4 * sub + 1):
        if N % f == 0 and (N // f) % 128 == 0 and (B * f) % sub == 0:
            return f
    return 1  # fall back to partially-dense sublanes (still correct)


def _dense_tiles(Brows, N, itemsize, tile_budget_bytes):
    """Pick (rb, tn) tiles: packed sublanes, ~tile_budget bytes, balanced
    trailing block, and an even grid count on a parallel axis when possible."""
    sub = max(8, 32 // max(1, itemsize))           # packed sublanes per vreg
    if Brows >= sub:
        rb = min((Brows // sub) * sub, 4 * sub)     # up to 4 vregs of rows
    else:
        rb = Brows                                  # == full dim (allowed)

    if N <= 128:
        tn = N
    else:
        tn_target = max(128, tile_budget_bytes // max(1, rb * itemsize))
        tn_target = min(tn_target, N)
        ncb = max(1, _cdiv(N, tn_target))
        # Balance the column blocks so the last one is not mostly padding.
        tn = min(_round_up(_cdiv(N, ncb), 128), _round_up(N, 128))

    def grid_of(rb_, tn_):
        return _cdiv(Brows, rb_), _cdiv(N, tn_)

    gi, gj = grid_of(rb, tn)
    # v7x dual-TC: prefer an even block count on some parallel axis.
    if gi % 2 != 0 and gj % 2 != 0:
        if rb >= 2 * sub:
            rb_half = max(sub, ((rb // 2) // sub) * sub)
            gi2, _ = grid_of(rb_half, tn)
            if gi2 % 2 == 0:
                rb, gi = rb_half, gi2
        if gi % 2 != 0 and gj % 2 != 0 and tn >= 256:
            tn_half = max(128, ((tn // 2) // 128) * 128)
            _, gj2 = grid_of(rb, tn_half)
            if gj2 % 2 == 0:
                tn, gj = tn_half, gj2
    # Always keep >= 2 grid steps when the shape allows (pipelining / dual TC).
    if gi * gj < 2:
        if tn >= 256:
            tn = max(128, ((tn // 2) // 128) * 128)
        elif rb >= 2 * sub:
            rb = max(sub, ((rb // 2) // sub) * sub)
    return rb, tn


# ----------------------------------------------------------------------------
# Shared in-kernel math
# ----------------------------------------------------------------------------
def _apply_scale(x, s, out_dtype):
    """x * s with dtype-appropriate arithmetic.  s is a small f32 array that
    broadcasts against x ((rb,1) or (1,1))."""
    if x.dtype == jnp.bfloat16 or x.dtype == jnp.float16:
        # Native 16-bit VPU multiply (v6e/v7x); legalized automatically on v5e.
        return (x * s.astype(x.dtype)).astype(out_dtype)
    if jnp.issubdtype(x.dtype, jnp.floating):
        return (x.astype(jnp.float32) * s).astype(out_dtype)
    # Integer-ish inputs: round instead of truncating.
    return jnp.round(x.astype(jnp.float32) * s).astype(out_dtype)


# ----------------------------------------------------------------------------
# Path B: dense auto-pipelined kernel
# ----------------------------------------------------------------------------
def _drop_path_dense_kernel(x_ref, scale_ref, o_ref):
    # x_ref: (rb, tn) tile, scale_ref: (rb, 1) f32 per-row scale, o_ref: (rb, tn)
    o_ref[...] = _apply_scale(x_ref[...], scale_ref[...], o_ref.dtype)


def _drop_path_dense(xf, scale_rows, vmem_total, donate_x=False):
    Brows, N = xf.shape
    itemsize = jnp.dtype(xf.dtype).itemsize
    tile_budget = min(8 << 20, max(1 << 20, (vmem_total - (4 << 20)) // 4))
    rb, tn = _dense_tiles(Brows, N, itemsize, tile_budget)
    grid = (_cdiv(Brows, rb), _cdiv(N, tn))
    tile_bytes = rb * tn * itemsize
    vmem_limit = int(min(vmem_total, max(4 * tile_bytes + (4 << 20), 16 << 20)))

    kwargs = {}
    if donate_x:
        # Caller must donate xf (dead after this op); output reuses its buffer.
        kwargs["input_output_aliases"] = {0: 0}

    return pl.pallas_call(
        _drop_path_dense_kernel,
        out_shape=jax.ShapeDtypeStruct((Brows, N), xf.dtype),
        grid=grid,
        in_specs=[
            pl.BlockSpec((rb, tn), lambda i, j: (i, j)),
            pl.BlockSpec((rb, 1), lambda i, j: (i, 0)),
        ],
        out_specs=pl.BlockSpec((rb, tn), lambda i, j: (i, j)),
        compiler_params=pltpu.CompilerParams(
            dimension_semantics=("parallel", "parallel"),
            vmem_limit_bytes=vmem_limit,
        ),
        **kwargs,
    )(xf, scale_rows)


# ----------------------------------------------------------------------------
# Path A: per-sample manual-DMA kernel that skips reads for dropped samples
# ----------------------------------------------------------------------------
def _drop_path_skip_kernel(mask_ref, scale_ref, x_hbm, o_ref, buf, sem):
    """mask_ref:  (B,)  int32 SMEM, 0 = dropped sample
       scale_ref: (1,1) f32 VMEM, per-sample scale = mask / keep_prob
       x_hbm:     (B, R, C) input left in HBM (memory_space=ANY)
       o_ref:     (R, C) output block (sample b)
       buf:       (2, R, C) VMEM double buffer, sem: DMA semaphores (2,)"""
    b = pl.program_id(0)
    nb = pl.num_programs(0)
    slot = b % 2

    # Prime the input pipeline on the first grid step (only if sample 0 is kept).
    @pl.when(jnp.logical_and(b == 0, mask_ref[0] != 0))
    def _():
        pltpu.make_async_copy(x_hbm.at[0], buf.at[0], sem.at[0]).start()

    # Prefetch the next kept sample; overlaps with this step's compute + writeback.
    @pl.when(b + 1 < nb)
    def _():
        @pl.when(mask_ref[b + 1] != 0)
        def _():
            pltpu.make_async_copy(
                x_hbm.at[b + 1], buf.at[1 - slot], sem.at[1 - slot]).start()

    @pl.when(mask_ref[b] != 0)
    def _():
        # Wait for this sample's DMA (started at the previous step or the prime).
        pltpu.make_async_copy(x_hbm.at[b], buf.at[slot], sem.at[slot]).wait()
        o_ref[...] = _apply_scale(buf[slot], scale_ref[...], o_ref.dtype)

    @pl.when(mask_ref[b] == 0)
    def _():
        # Dropped sample: no input DMA at all, just store zeros.
        o_ref[...] = jnp.zeros_like(o_ref)


def _drop_path_skip(x3, mask_i32, scale, vmem_total):
    B, R, C = x3.shape
    itemsize = jnp.dtype(x3.dtype).itemsize
    sample_bytes = R * C * itemsize
    vmem_limit = int(min(vmem_total, max(4 * sample_bytes + (4 << 20), 16 << 20)))
    scale3 = scale.reshape(B, 1, 1)

    return pl.pallas_call(
        _drop_path_skip_kernel,
        out_shape=jax.ShapeDtypeStruct((B, R, C), x3.dtype),
        grid=(B,),
        in_specs=[
            pl.BlockSpec(memory_space=pltpu.MemorySpace.SMEM),   # mask (B,) int32
            pl.BlockSpec((None, 1, 1), lambda b: (b, 0, 0)),      # scale (1,1) f32
            pl.BlockSpec(memory_space=pl.ANY),                    # x stays in HBM
        ],
        out_specs=pl.BlockSpec((None, R, C), lambda b: (b, 0, 0)),
        scratch_shapes=[
            pltpu.VMEM((2, R, C), x3.dtype),
            pltpu.SemaphoreType.DMA((2,)),
        ],
        compiler_params=pltpu.CompilerParams(
            # "arbitrary": sequential grid keeps the cross-step prefetch chain
            # valid (see module TODO about a megacore-friendly variant).
            dimension_semantics=("arbitrary",),
            vmem_limit_bytes=vmem_limit,
        ),
    )(mask_i32, scale3, x3)


# ----------------------------------------------------------------------------
# Public wrapper (== StatefulDropPath.forward)
# ----------------------------------------------------------------------------
def stateful_drop_path(x, random_tensor, drop_prob, training=True,
                       skip_dropped_dma=True, donate_x=False):
    """Pallas implementation of StatefulDropPath.forward.

    x:             (B, ...) array (e.g. NCHW).
    random_tensor: (B,) per-sample mask, normally 0/1 from `reset` (any dtype).
    drop_prob / training must be static Python values (they gate the early
    return, matching `if self.drop_prob == 0.0 or not self.training`).
    skip_dropped_dma: use the per-sample kernel that skips HBM reads for
    dropped samples when the shape allows it.
    donate_x: alias the output onto x's buffer (dense path only; caller must
    donate x, i.e. not use it afterwards).
    """
    if drop_prob is None or drop_prob == 0.0 or not training:
        return x

    keep_prob = 1.0 - float(drop_prob)
    orig_shape = x.shape
    B = int(orig_shape[0])
    xflat = x.reshape(B, -1)
    N = int(xflat.shape[1])
    itemsize = jnp.dtype(x.dtype).itemsize

    scale = random_tensor.reshape(B).astype(jnp.float32) * jnp.float32(1.0 / keep_prob)
    vmem_total = _vmem_budget_bytes()

    # --- Path A: skip input DMA for dropped samples --------------------------
    if (skip_dropped_dma and not donate_x and N >= 128 and N % 128 == 0
            and N * itemsize <= (6 << 20)):
        R, C = _sample_rc(N)
        mask_i32 = (random_tensor.reshape(B) != 0).astype(jnp.int32)
        out3 = _drop_path_skip(x.reshape(B, R, C), mask_i32, scale, vmem_total)
        return out3.reshape(orig_shape)

    # --- Path B: dense auto-pipelined multiply --------------------------------
    sub = max(8, 32 // max(1, itemsize))
    f = _small_batch_fold(B, N, sub)
    if f > 1:
        xf = xflat.reshape(B * f, N // f)
        scale_rows = jnp.repeat(scale, f).reshape(B * f, 1)
    else:
        xf = xflat
        scale_rows = scale.reshape(B, 1)
    out = _drop_path_dense(xf, scale_rows, vmem_total, donate_x=donate_x)
    return out.reshape(orig_shape)


def reset_random_tensor(key, B, drop_prob, dtype=jnp.float32):
    """Equivalent of StatefulDropPath.reset: floor(keep_prob + U[0,1)) per sample."""
    keep_prob = 1.0 - drop_prob
    return jnp.floor(keep_prob + jax.random.uniform(key, (B,), dtype=dtype))


# ----------------------------------------------------------------------------
# Self-test
# ----------------------------------------------------------------------------
if __name__ == "__main__":
    key = jax.random.PRNGKey(0)
    k_x, k_mask = jax.random.split(key)

    B, C, H, W = 2, 4, 16, 16
    drop_prob = 0.3
    keep_prob = 1.0 - drop_prob

    x = jax.random.normal(k_x, (B, C, H, W), dtype=jnp.float32)
    random_tensor = reset_random_tensor(k_mask, B, drop_prob, dtype=x.dtype)

    def ref_fwd(xv, mask):
        return (xv / keep_prob) * mask.reshape((xv.shape[0],) + (1,) * (xv.ndim - 1))

    # 1) Default (per-sample DMA-skip) path vs pure-JAX reference.
    out = jax.block_until_ready(
        stateful_drop_path(x, random_tensor, drop_prob, training=True))
    assert out.shape == x.shape and out.dtype == x.dtype
    assert jnp.allclose(out, ref_fwd(x, random_tensor), rtol=1e-5, atol=1e-6)

    # 2) Deterministic mask with one kept and one dropped sample (exercises the
    #    dropped-sample DMA-skip branch).
    mask = jnp.array([1.0, 0.0], dtype=x.dtype)
    out2 = jax.block_until_ready(
        stateful_drop_path(x, mask, drop_prob, training=True))
    assert jnp.allclose(out2, ref_fwd(x, mask), rtol=1e-5, atol=1e-6)
    assert jnp.all(out2[1] == 0.0)

    # 3) Dense auto-pipelined path (small-batch row folding + even grid split).
    out3 = jax.block_until_ready(
        stateful_drop_path(x, mask, drop_prob, training=True,
                           skip_dropped_dma=False))
    assert jnp.allclose(out3, ref_fwd(x, mask), rtol=1e-5, atol=1e-6)

    # 4) bf16 exercises the native-dtype multiply on both kernels.
    xb = x.astype(jnp.bfloat16)
    refb = ref_fwd(xb.astype(jnp.float32), mask)
    outb1 = jax.block_until_ready(
        stateful_drop_path(xb, mask, drop_prob, training=True))
    outb2 = jax.block_until_ready(
        stateful_drop_path(xb, mask, drop_prob, training=True,
                           skip_dropped_dma=False))
    assert outb1.dtype == jnp.bfloat16 and outb2.dtype == jnp.bfloat16
    assert jnp.allclose(outb1.astype(jnp.float32), refb, rtol=2e-2, atol=2e-2)
    assert jnp.allclose(outb2.astype(jnp.float32), refb, rtol=2e-2, atol=2e-2)

    # 5) Eval mode / drop_prob == 0 return x unchanged (no kernel launch).
    assert jnp.array_equal(
        stateful_drop_path(x, random_tensor, drop_prob, training=False), x)
    assert jnp.array_equal(
        stateful_drop_path(x, random_tensor, 0.0, training=True), x)

    print("KERNEL_OK")
</pallas_src>

<mosaic_0001>
module attributes {stable_mosaic.version = 11 : i64} {
  func.func @_drop_path_skip_kernel(%arg0: i32, %arg1: memref<2xi32, #tpu.memory_space<smem>>, %arg2: memref<1x1x1xf32, #tpu.memory_space<vmem>>, %arg3: memref<2x8x128xf32, #tpu.memory_space<any>>, %arg4: memref<1x8x128xf32, #tpu.memory_space<vmem>>, %arg5: memref<2x8x128xf32, #tpu.memory_space<vmem>>, %arg6: memref<2x!tpu.dma_semaphore, #tpu.memory_space<semaphore_mem>>) attributes {dimension_semantics = [#tpu.dimension_semantics<arbitrary>], iteration_bounds = array<i64: 2>, scalar_prefetch = 0 : i64, scratch_operands = 2 : i64, tpu.core_type = #tpu.core_type<tc>, window_params = [{transform_indices = @transform_0, window_bounds = array<i64: 2>}, {transform_indices = @transform_1, window_bounds = array<i64: 1, 1, 1>}, {}, {transform_indices = @transform_3, window_bounds = array<i64: 1, 8, 128>}]} {
    %c2_i32 = arith.constant 2 : i32
    %c0_i32 = arith.constant 0 : i32
    %0 = arith.cmpi eq, %c2_i32, %c0_i32 : i32
    %c1_i32 = arith.constant 1 : i32
    %1 = arith.select %0, %c1_i32, %c2_i32 : i32
    %2 = arith.remsi %arg0, %1 : i32
    %c0_i32_0 = arith.constant 0 : i32
    %3 = arith.cmpi ne, %2, %c0_i32_0 : i32
    %c0_i32_1 = arith.constant 0 : i32
    %4 = arith.cmpi slt, %2, %c0_i32_1 : i32
    %c0_i32_2 = arith.constant 0 : i32
    %5 = arith.cmpi slt, %1, %c0_i32_2 : i32
    %6 = arith.xori %4, %5 : i1
    %7 = arith.andi %6, %3 : i1
    %8 = arith.addi %2, %1 : i32
    %9 = arith.select %7, %8, %2 : i32
    %c0_i32_3 = arith.constant 0 : i32
    %10 = arith.cmpi eq, %arg0, %c0_i32_3 : i32
    %c0 = arith.constant 0 : index
    %11 = memref.load %arg1[%c0] : memref<2xi32, #tpu.memory_space<smem>>
    %c0_i32_4 = arith.constant 0 : i32
    %12 = arith.cmpi ne, %11, %c0_i32_4 : i32
    %13 = arith.andi %10, %12 : i1
    %14 = arith.extui %13 : i1 to i32
    %c0_i32_5 = arith.constant 0 : i32
    %15 = arith.cmpi ne, %14, %c0_i32_5 : i32
    scf.if %15 {
      %c0_i32_13 = arith.constant 0 : i32
      %c0_i32_14 = arith.constant 0 : i32
      %c0_i32_15 = arith.constant 0 : i32
      %c0_i32_16 = arith.constant 0 : i32
      %c0_i32_17 = arith.constant 0 : i32
      %30 = tpu.memref_slice %arg3[%c0_i32_13, %c0_i32_16, %c0_i32_17] : memref<2x8x128xf32, #tpu.memory_space<any>> -> memref<1x8x128xf32, #tpu.memory_space<any>>
      %31 = tpu.memref_squeeze %30 : memref<1x8x128xf32, #tpu.memory_space<any>> -> memref<8x128xf32, #tpu.memory_space<any>>
      %c0_i32_18 = arith.constant 0 : i32
      %c0_i32_19 = arith.constant 0 : i32
      %32 = tpu.memref_slice %arg5[%c0_i32_14, %c0_i32_18, %c0_i32_19] : memref<2x8x128xf32, #tpu.memory_space<vmem>> -> memref<1x8x128xf32, #tpu.memory_space<vmem>>
      %33 = tpu.memref_squeeze %32 : memref<1x8x128xf32, #tpu.memory_space<vmem>> -> memref<8x128xf32, #tpu.memory_space<vmem>>
      %34 = tpu.memref_slice %arg6[%c0_i32_15] : memref<2x!tpu.dma_semaphore, #tpu.memory_space<semaphore_mem>> -> memref<1x!tpu.dma_semaphore, #tpu.memory_space<semaphore_mem>>
      %35 = tpu.memref_squeeze %34 : memref<1x!tpu.dma_semaphore, #tpu.memory_space<semaphore_mem>> -> memref<!tpu.dma_semaphore, #tpu.memory_space<semaphore_mem>>
      tpu.enqueue_dma source(%31 : memref<8x128xf32, #tpu.memory_space<any>>) target(%33 : memref<8x128xf32, #tpu.memory_space<vmem>>) target_semaphore(%35 : memref<!tpu.dma_semaphore, #tpu.memory_space<semaphore_mem>>)
    } else {
    }
    %c1_i32_6 = arith.constant 1 : i32
    %16 = arith.addi %arg0, %c1_i32_6 : i32
    %c2_i32_7 = arith.constant 2 : i32
    %17 = arith.cmpi slt, %16, %c2_i32_7 : i32
    %18 = arith.extui %17 : i1 to i32
    %c0_i32_8 = arith.constant 0 : i32
    %19 = arith.cmpi ne, %18, %c0_i32_8 : i32
    scf.if %19 {
      %c1_i32_13 = arith.constant 1 : i32
      %30 = arith.addi %arg0, %c1_i32_13 : i32
      %31 = arith.index_cast %30 : i32 to index
      %32 = memref.load %arg1[%31] : memref<2xi32, #tpu.memory_space<smem>>
      %c0_i32_14 = arith.constant 0 : i32
      %33 = arith.cmpi ne, %32, %c0_i32_14 : i32
      %34 = arith.extui %33 : i1 to i32
      %c0_i32_15 = arith.constant 0 : i32
      %35 = arith.cmpi ne, %34, %c0_i32_15 : i32
      scf.if %35 {
        %c1_i32_16 = arith.constant 1 : i32
        %36 = arith.addi %arg0, %c1_i32_16 : i32
        %c1_i32_17 = arith.constant 1 : i32
        %37 = arith.subi %c1_i32_17, %9 : i32
        %c1_i32_18 = arith.constant 1 : i32
        %38 = arith.subi %c1_i32_18, %9 : i32
        %c0_i32_19 = arith.constant 0 : i32
        %c0_i32_20 = arith.constant 0 : i32
        %39 = tpu.memref_slice %arg3[%36, %c0_i32_19, %c0_i32_20] : memref<2x8x128xf32, #tpu.memory_space<any>> -> memref<1x8x128xf32, #tpu.memory_space<any>>
        %40 = tpu.memref_squeeze %39 : memref<1x8x128xf32, #tpu.memory_space<any>> -> memref<8x128xf32, #tpu.memory_space<any>>
        %c0_i32_21 = arith.constant 0 : i32
        %c0_i32_22 = arith.constant 0 : i32
        %41 = tpu.memref_slice %arg5[%37, %c0_i32_21, %c0_i32_22] : memref<2x8x128xf32, #tpu.memory_space<vmem>> -> memref<1x8x128xf32, #tpu.memory_space<vmem>>
        %42 = tpu.memref_squeeze %41 : memref<1x8x128xf32, #tpu.memory_space<vmem>> -> memref<8x128xf32, #tpu.memory_space<vmem>>
        %43 = tpu.memref_slice %arg6[%38] : memref<2x!tpu.dma_semaphore, #tpu.memory_space<semaphore_mem>> -> memref<1x!tpu.dma_semaphore, #tpu.memory_space<semaphore_mem>>
        %44 = tpu.memref_squeeze %43 : memref<1x!tpu.dma_semaphore, #tpu.memory_space<semaphore_mem>> -> memref<!tpu.dma_semaphore, #tpu.memory_space<semaphore_mem>>
        tpu.enqueue_dma source(%40 : memref<8x128xf32, #tpu.memory_space<any>>) target(%42 : memref<8x128xf32, #tpu.memory_space<vmem>>) target_semaphore(%44 : memref<!tpu.dma_semaphore, #tpu.memory_space<semaphore_mem>>)
      } else {
      }
    } else {
    }
    %20 = arith.index_cast %arg0 : i32 to index
    %21 = memref.load %arg1[%20] : memref<2xi32, #tpu.memory_space<smem>>
    %c0_i32_9 = arith.constant 0 : i32
    %22 = arith.cmpi ne, %21, %c0_i32_9 : i32
    %23 = arith.extui %22 : i1 to i32
    %c0_i32_10 = arith.constant 0 : i32
    %24 = arith.cmpi ne, %23, %c0_i32_10 : i32
    scf.if %24 {
      %c0_i32_13 = arith.constant 0 : i32
      %c0_i32_14 = arith.constant 0 : i32
      %30 = tpu.memref_slice %arg3[%arg0, %c0_i32_13, %c0_i32_14] : memref<2x8x128xf32, #tpu.memory_space<any>> -> memref<1x8x128xf32, #tpu.memory_space<any>>
      %31 = tpu.memref_squeeze %30 : memref<1x8x128xf32, #tpu.memory_space<any>> -> memref<8x128xf32, #tpu.memory_space<any>>
      %c0_i32_15 = arith.constant 0 : i32
      %c0_i32_16 = arith.constant 0 : i32
      %32 = tpu.memref_slice %arg5[%9, %c0_i32_15, %c0_i32_16] : memref<2x8x128xf32, #tpu.memory_space<vmem>> -> memref<1x8x128xf32, #tpu.memory_space<vmem>>
      %33 = tpu.memref_squeeze %32 : memref<1x8x128xf32, #tpu.memory_space<vmem>> -> memref<8x128xf32, #tpu.memory_space<vmem>>
      %34 = tpu.memref_slice %arg6[%9] : memref<2x!tpu.dma_semaphore, #tpu.memory_space<semaphore_mem>> -> memref<1x!tpu.dma_semaphore, #tpu.memory_space<semaphore_mem>>
      %35 = tpu.memref_squeeze %34 : memref<1x!tpu.dma_semaphore, #tpu.memory_space<semaphore_mem>> -> memref<!tpu.dma_semaphore, #tpu.memory_space<semaphore_mem>>
      tpu.wait_dma2 semaphore(%35 : memref<!tpu.dma_semaphore, #tpu.memory_space<semaphore_mem>>) src(%31 : memref<8x128xf32, #tpu.memory_space<any>>) dst(%33 : memref<8x128xf32, #tpu.memory_space<vmem>>)
      %36 = arith.index_cast %9 : i32 to index
      %c0_17 = arith.constant 0 : index
      %c0_18 = arith.constant 0 : index
      %37 = vector.load %arg5[%36, %c0_17, %c0_18] : memref<2x8x128xf32, #tpu.memory_space<vmem>>, vector<1x8x128xf32>
      %38 = vector.shape_cast %37 : vector<1x8x128xf32> to vector<8x128xf32>
      %c0_19 = arith.constant 0 : index
      %c0_20 = arith.constant 0 : index
      %c0_21 = arith.constant 0 : index
      %39 = vector.load %arg2[%c0_19, %c0_20, %c0_21] : memref<1x1x1xf32, #tpu.memory_space<vmem>>, vector<1x1x1xf32>
      %40 = vector.shape_cast %39 : vector<1x1x1xf32> to vector<1x1xf32>
      %41 = vector.broadcast %40 : vector<1x1xf32> to vector<8x128xf32>
      %42 = arith.mulf %38, %41 : vector<8x128xf32>
      %c0_22 = arith.constant 0 : index
      %c0_23 = arith.constant 0 : index
      %c0_24 = arith.constant 0 : index
      %43 = vector.load %arg4[%c0_22, %c0_23, %c0_24] : memref<1x8x128xf32, #tpu.memory_space<vmem>>, vector<1x8x128xf32>
      %44 = vector.shape_cast %43 : vector<1x8x128xf32> to vector<8x128xf32>
      %45 = vector.shape_cast %42 : vector<8x128xf32> to vector<1x8x128xf32>
      tpu.vector_store %arg4[%c0_22, %c0_23, %c0_24], %45 {strides = array<i32>} : memref<1x8x128xf32, #tpu.memory_space<vmem>>, vector<1x8x128xf32>,
    } else {
    }
    %25 = arith.index_cast %arg0 : i32 to index
    %26 = memref.load %arg1[%25] : memref<2xi32, #tpu.memory_space<smem>>
    %c0_i32_11 = arith.constant 0 : i32
    %27 = arith.cmpi eq, %26, %c0_i32_11 : i32
    %28 = arith.extui %27 : i1 to i32
    %c0_i32_12 = arith.constant 0 : i32
    %29 = arith.cmpi ne, %28, %c0_i32_12 : i32
    scf.if %29 {
      %cst = arith.constant 0.000000e+00 : f32
      %30 = vector.broadcast %cst : f32 to vector<8x128xf32>
      %c0_13 = arith.constant 0 : index
      %c0_14 = arith.constant 0 : index
      %c0_15 = arith.constant 0 : index
      %31 = vector.load %arg4[%c0_13, %c0_14, %c0_15] : memref<1x8x128xf32, #tpu.memory_space<vmem>>, vector<1x8x128xf32>
      %32 = vector.shape_cast %31 : vector<1x8x128xf32> to vector<8x128xf32>
      %33 = vector.shape_cast %30 : vector<8x128xf32> to vector<1x8x128xf32>
      tpu.vector_store %arg4[%c0_13, %c0_14, %c0_15], %33 {strides = array<i32>} : memref<1x8x128xf32, #tpu.memory_space<vmem>>, vector<1x8x128xf32>,
    } else {
    }
    return
  }
  func.func @transform_0(%arg0: i32) -> i32 {
    %c0_i32 = arith.constant 0 : i32
    %c0_i32_0 = arith.constant 0 : i32
    return %c0_i32 : i32
  }
  func.func @transform_1(%arg0: i32) -> (i32, i32, i32) {
    %c0_i32 = arith.constant 0 : i32
    %c0_i32_0 = arith.constant 0 : i32
    %c0_i32_1 = arith.constant 0 : i32
    return %arg0, %c0_i32, %c0_i32_0 : i32, i32, i32
  }
  func.func @transform_3(%arg0: i32) -> (i32, i32, i32) {
    %c0_i32 = arith.constant 0 : i32
    %c0_i32_0 = arith.constant 0 : i32
    %c0_i32_1 = arith.constant 0 : i32
    return %arg0, %c0_i32, %c0_i32_0 : i32, i32, i32
  }
}

</mosaic_0001>

<llo_original>
// kernel: tpu_custom_call.1
$region0: #{tpu_custom_call.1}
  #allocation0 [shape = 'u32[]', space=smem, size = 0x4, offset = 0x4, fixed_abs, tag = 'smem constant byte address 0x4 - core index']
  #allocation1 [shape = 'u32[144,128]{1,0:T(1,128)}', space=vmem, size = 0x12000, scoped, tag = 'internal scratch']
  #allocation2 [shape = 'f32[2,8,128]{2,1,0:T(8,128)}', space=vmem, size = 0x2000, scoped, tag = 'scratch operand']
  #allocation3 [shape = 's32[2]{0}', space=sflag, size = 0x8, scoped, tag = 'scratch operand']
  #allocation8 [shape = 's32[]', space=sflag, size = 0x4, offset = 0, fixed_abs, tag = 'sflag constant byte address 0x0 - dummy sync flag']
  #allocation9 [shape = 's32[]', space=sflag, size = 0x4, offset = 0, fixed_abs, tag = 'sflag constant byte address 0x0 - dummy sync flag']
  #allocation10 [shape = 'u32[]', space=smem, size = 0x4, offset = 0x44, fixed_abs, tag = 'smem constant byte address 0x44 - assertion arg 0']
  #allocation11 [shape = 'u32[]', space=smem, size = 0x4, offset = 0x48, fixed_abs, tag = 'smem constant byte address 0x48 - assertion arg 1']
  #allocation12 [shape = 's32[]', space=sflag, size = 0x4, offset = 0, fixed_abs, tag = 'sflag constant byte address 0x0 - dummy sync flag']
  #allocation13 [shape = 's32[]', space=sflag, size = 0x4, offset = 0, fixed_abs, tag = 'sflag constant byte address 0x0 - dummy sync flag']
  %s0 = inlined_call_operand.vmem [shape: s32[2], index: 0, kind: input, shape index: {}]
  %s1 = inlined_call_operand.vmem [shape: f32[2,1,1], index: 1, kind: input, shape index: {}]
  %s2 = inlined_call_operand.hbm [shape: f32[2,8,128], index: 2, kind: input, shape index: {}]
  %s3 = inlined_call_operand.hbm [shape: f32[2,8,128], index: 3, kind: output, shape index: {}]
  %s4 = sld [smem:[#allocation0]]
  $region73: #{tpu_custom_call.1} parent=0
    _
  %s6 = ssub.s32 1, %s4
  %s7 = scalar_select 0, %s6, %s4
  $region1: #{tpu_custom_call.1} parent=0
    #allocation4 [shape = 'u8[512]{0}', space=smem, size = 0x200, scoped, tag = 'input window, operand 0, single buffered']
    #allocation5 [shape = 's32[2]{0}', space=sflag, size = 0x8, scoped, tag = 'scoped memory for tpu_custom_call.1']
    #allocation6 [shape = 's32[2]{0}', space=sflag, size = 0x8, scoped, tag = 'scoped memory for tpu_custom_call.1']
    #allocation7 [shape = 'u8[8192]{0}', space=vmem, size = 0x2000, scoped, tag = 'output window, operand 0']
    %8 = vsyncpa [#allocation6], 0
    %9 = vsyncpa [#allocation5], 0
    %s10 = scalar_lea.sflag [#allocation5], 1
    %11 = vsyncpa %s10, 0
    loop: start=0, step=1, limit=4
    $region2: #{tpu_custom_call.1} parent=1 // loop_pre_header
      _
    $region3: #{tpu_custom_call.1} parent=1 // loop_header
      %s13 = sphi 0, %s17
      %p14 = scmp.ge.s32.totalorder %s13, 4
      %s21 = sphi 0, %s21
      %s23 = sphi 0, %s21
      %s24 = sphi 0, %s23
      %s38 = sphi 0, %s24
      %s44 = sphi 0, %s46
      %s47 = sphi 0, %s44
      %s48 = sphi 0, %s47
      %s64 = sphi 0, %s48
      %s70 = sphi 0, %s72
      %s73 = sphi 0, %s70
      %s74 = sphi 0, %s73
      %s90 = sphi 0, %s74
    $region4: #{tpu_custom_call.1} parent=1 // loop_header_branch
      %16 = sbr.rel (%p14) target = $region8
    $region5: #{tpu_custom_call.1} parent=1 // loop_body
      %s18 = ssub.s32 %s13, 1
      %s19 = ssub.s32 %s13, 2
      %s20 = sadd.s32 %s13, 1
      %s22 = sadd.s32 %s21, 1
      %p25 = scmp.eq.s32.totalorder %s13, 1
      %p26 = scmp.ne.s32.totalorder %s21, %s23
      %p27 = scmp.eq.s32.totalorder %s13, 0
      %p28 = por %p26, %p27
      %p29 = scmp.ne.s32.totalorder %s21, %s23
      %p30 = scmp.eq.s32.totalorder %s18, 1
      %p31 = por %p29, %p30
      %p32 = scmp.ne.s32.totalorder %s23, %s24
      %p33 = scmp.eq.s32.totalorder %s18, 0
      %p34 = por %p32, %p33
      %p35 = scmp.ne.s32.totalorder %s23, %s24
      %p36 = scmp.eq.s32.totalorder %s19, 1
      %p37 = por %p35, %p36
      %p39 = scmp.ne.s32.totalorder %s24, %s38
      %p40 = scmp.eq.s32.totalorder %s19, 0
      %p41 = por %p39, %p40
      %s42 = ssub.s32 %s13, %s20
      %p43 = scmp.eq.s32.totalorder %s42, 0
      %s45 = sadd.s32 %s44, 1
      %s46 = scalar_select %p43, %s44, %s45
      %p49 = pneg %p43
      %p50 = scmp.eq.s32.totalorder %s13, 1
      %p51 = por %p49, %p50
      %p52 = scmp.ne.s32.totalorder %s44, %s47
      %p53 = scmp.eq.s32.totalorder %s13, 0
      %p54 = por %p52, %p53
      %p55 = scmp.ne.s32.totalorder %s44, %s47
      %p56 = scmp.eq.s32.totalorder %s18, 1
      %p57 = por %p55, %p56
      %p58 = scmp.ne.s32.totalorder %s47, %s48
      %p59 = scmp.eq.s32.totalorder %s18, 0
      %p60 = por %p58, %p59
      %p61 = scmp.ne.s32.totalorder %s47, %s48
      %p62 = scmp.eq.s32.totalorder %s19, 1
      %p63 = por %p61, %p62
      %p65 = scmp.ne.s32.totalorder %s48, %s64
      %p66 = scmp.eq.s32.totalorder %s19, 0
      %p67 = por %p65, %p66
      %s68 = ssub.s32 %s13, %s20
      %p69 = scmp.eq.s32.totalorder %s68, 0
      %s71 = sadd.s32 %s70, 1
      %s72 = scalar_select %p69, %s70, %s71
      %p75 = pneg %p69
      %p76 = scmp.eq.s32.totalorder %s13, 1
      %p77 = por %p75, %p76
      %p78 = scmp.ne.s32.totalorder %s70, %s73
      %p79 = scmp.eq.s32.totalorder %s13, 0
      %p80 = por %p78, %p79
      %p81 = scmp.ne.s32.totalorder %s70, %s73
      %p82 = scmp.eq.s32.totalorder %s18, 1
      %p83 = por %p81, %p82
      %p84 = scmp.ne.s32.totalorder %s73, %s74
      %p85 = scmp.eq.s32.totalorder %s18, 0
      %p86 = por %p84, %p85
      %p87 = scmp.ne.s32.totalorder %s73, %s74
      %p88 = scmp.eq.s32.totalorder %s19, 1
      %p89 = por %p87, %p88
      %p91 = scmp.ne.s32.totalorder %s74, %s90
      %p92 = scmp.eq.s32.totalorder %s19, 0
      %p93 = por %p91, %p92
      %p94 = scmp.le.s32.totalorder 1, %s13
      %p95 = scmp.lt.s32.totalorder %s13, 3
      %p96 = pnand %p94, %p95
      %p97 = pneg %p96
      // Predicated region
      $region9: #{tpu_custom_call.1} parent=5 // pred_check
        _
      $region10: #{tpu_custom_call.1} parent=5 // pred_check_branch
        %99 = sbr.rel (%p96) target = $region12
      $region11: #{tpu_custom_call.1} parent=5 // pred_region
        %s100 = ssub.s32 %s13, 1
        // Predicated region
        $region13: #{tpu_custom_call.1} parent=11 // pred_check
          %p101 = pneg %p34
        $region14: #{tpu_custom_call.1} parent=11 // pred_check_branch
          %103 = sbr.rel (%p101) target = $region16
        $region15: #{tpu_custom_call.1} parent=11 // pred_region
          %s105 = ssub.s32 16, 16
          %106 = vsyncadd [#allocation6], %s105
          %s108 = sshll.u32 %s0, 4
          %s109 = int_to_ptr.vmem [resolvable:$true] %s108
          %111 = dma.vmem_to_smem %s109, 16, [#allocation4], [#allocation6]
        $region16: #{tpu_custom_call.1} parent=11 // pred_fallthru
          _
      $region12: #{tpu_custom_call.1} parent=5 // pred_fallthru
        _
      %p112 = scmp.lt.s32.totalorder %s13, 2
      // Predicated region
      $region17: #{tpu_custom_call.1} parent=5 // pred_check
        %p113 = pneg %p112
      $region18: #{tpu_custom_call.1} parent=5 // pred_check_branch
        %115 = sbr.rel (%p113) target = $region20
      $region19: #{tpu_custom_call.1} parent=5 // pred_region
        // Predicated region
        $region21: #{tpu_custom_call.1} parent=19 // pred_check
          %p116 = pneg %p54
        $region22: #{tpu_custom_call.1} parent=19 // pred_check_branch
          %118 = sbr.rel (%p116) target = $region24
        $region23: #{tpu_custom_call.1} parent=19 // pred_region
          %p119 = scmp.lt.s32.totalorder %s13, 1
          %s120 = scalar_select %p119, %s13, 1
          %s121 = scalar_lea.vmem %s1, %s120
        $region24: #{tpu_custom_call.1} parent=19 // pred_fallthru
          _
      $region20: #{tpu_custom_call.1} parent=5 // pred_fallthru
        _
      %p122 = scmp.le.s32.totalorder 1, %s13
      %p123 = scmp.lt.s32.totalorder %s13, 3
      %p124 = pnand %p122, %p123
      %p125 = pneg %p124
      // Predicated region
      $region25: #{tpu_custom_call.1} parent=5 // pred_check
        _
      $region26: #{tpu_custom_call.1} parent=5 // pred_check_branch
        %127 = sbr.rel (%p124) target = $region28
      $region27: #{tpu_custom_call.1} parent=5 // pred_region
        %s128 = ssub.s32 %s13, 1
        // Predicated region
        $region29: #{tpu_custom_call.1} parent=27 // pred_check
          %p129 = pneg %p34
        $region30: #{tpu_custom_call.1} parent=27 // pred_check_branch
          %131 = sbr.rel (%p129) target = $region32
        $region31: #{tpu_custom_call.1} parent=27 // pred_region
          %132 = dma.done [#allocation6], 16
        $region32: #{tpu_custom_call.1} parent=27 // pred_fallthru
          _
        %133 = sfence
        %p134 = pneg %p34
        %p135 = pneg %p31
        %p136 = scmp.lt.s32.totalorder %s18, 1
        %s137 = scalar_select %p136, %s18, 1
        %s138 = scalar_lea.vmem %s1, %s137
        %p139 = pneg %p60
        %p140 = pneg %p57
        %p141 = pneg %p86
        %p142 = pneg %p83
        %s143 = sand.u32 %s73, 1
        %s144 = scalar_lea.sflag [#allocation5], %s143
        %s145 = sand.u32 %s73, 1
        %s146 = smul.addr %s145, 8
        %s147 = scalar_lea.vmem [#allocation7], %s146
        %p148 = scmp.lt.s32.totalorder %s18, 1
        %s149 = scalar_select %p148, %s18, 1
        %s150 = scalar_lea.vmem %s1, %s149
        %p151 = scmp.lt.s32.totalorder %s18, 0
        %s152 = ssub.s32 0, %s18
        %s153 = scalar_select %p151, %s152, %s18
        %s154 = sand.u32 %s153, 1
        %s155 = ssub.s32 0, %s154
        %s156 = scalar_select %p151, %s155, %s154
        %p157 = scmp.ne.s32.totalorder %s156, 0
        %p158 = scmp.lt.s32.totalorder %s156, 0
        %p159 = pnand %p158, %p157
        %p160 = pneg %p159
        %s161 = sadd.s32 %s156, 2
        %s162 = scalar_select %p160, %s161, %s156
        %p163 = scmp.eq.s32.totalorder %s18, 0
        %s164 = sld [smem:[#allocation4]]
        %p165 = scmp.ne.s32.totalorder %s164, 0
        %p166 = pnand %p163, %p165
        %p167 = pneg %p166
        // Predicated region
        $region33: #{tpu_custom_call.1} parent=27 // pred_check
          _
        $region34: #{tpu_custom_call.1} parent=27 // pred_check_branch
          %169 = sbr.rel (%p166) target = $region36
        $region35: #{tpu_custom_call.1} parent=27 // pred_region
          // Predicated region
          $region37: #{tpu_custom_call.1} parent=35 // pred_check
            _
          $region38: #{tpu_custom_call.1} parent=35 // pred_check_branch
            %171 = sbr.rel target = $region40
          $region39: #{tpu_custom_call.1} parent=35 // pred_region
            %172 = sst [smem:[#allocation10]] [#allocation9]
            %173 = sst [smem:[#allocation11]] [#allocation8]
          $region40: #{tpu_custom_call.1} parent=35 // pred_fallthru
            _
          %175 = shalt.err (0)
          %s177 = sshll.u32 [#allocation2], 4
          %s178 = int_to_ptr.vmem [resolvable:$true] %s177
          %180 = dma.hbm_to_vmem [thread:$0]  %s2, 128, %s178, [#allocation3]
        $region36: #{tpu_custom_call.1} parent=27 // pred_fallthru
          _
        %s181 = sadd.s32 %s18, 1
        %p182 = scmp.lt.s32.totalorder %s181, 2
        // Predicated region
        $region41: #{tpu_custom_call.1} parent=27 // pred_check
          %p183 = pneg %p182
        $region42: #{tpu_custom_call.1} parent=27 // pred_check_branch
          %185 = sbr.rel (%p183) target = $region44
        $region43: #{tpu_custom_call.1} parent=27 // pred_region
          %s186 = sld [smem:[#allocation4 + %s181]]
          %p187 = scmp.ne.s32.totalorder %s186, 0
          // Predicated region
          $region45: #{tpu_custom_call.1} parent=43 // pred_check
            %p188 = pneg %p187
          $region46: #{tpu_custom_call.1} parent=43 // pred_check_branch
            %190 = sbr.rel (%p188) target = $region48
          $region47: #{tpu_custom_call.1} parent=43 // pred_region
            %s191 = ssub.s32 1, %s162
            %s192 = smul.u32 %s181, 8
            %s193 = smul.addr %s192, 16
            %s194 = scalar_lea.hbm %s2, %s193
            %s195 = smul.u32 %s191, 8
            %s196 = scalar_lea.vmem [#allocation2], %s195
            %s197 = scalar_lea.sflag [#allocation3], %s191
            // Predicated region
            $region49: #{tpu_custom_call.1} parent=47 // pred_check
              _
            $region50: #{tpu_custom_call.1} parent=47 // pred_check_branch
              %199 = sbr.rel target = $region52
            $region51: #{tpu_custom_call.1} parent=47 // pred_region
              %200 = sst [smem:[#allocation10]] [#allocation13]
              %201 = sst [smem:[#allocation11]] [#allocation12]
            $region52: #{tpu_custom_call.1} parent=47 // pred_fallthru
              _
            %203 = shalt.err (0)
            %s205 = sshll.u32 %s196, 4
            %s206 = int_to_ptr.vmem [resolvable:$true] %s205
            %208 = dma.hbm_to_vmem [thread:$0]  %s194, 128, %s206, %s197
          $region48: #{tpu_custom_call.1} parent=43 // pred_fallthru
            _
        $region44: #{tpu_custom_call.1} parent=27 // pred_fallthru
          _
        %s209 = sld [smem:[#allocation4 + %s18]]
        %p210 = scmp.ne.s32.totalorder %s209, 0
        // Predicated region
        $region53: #{tpu_custom_call.1} parent=27 // pred_check
          %p211 = pneg %p210
        $region54: #{tpu_custom_call.1} parent=27 // pred_check_branch
          %213 = sbr.rel (%p211) target = $region56
        $region55: #{tpu_custom_call.1} parent=27 // pred_region
          %s214 = smul.u32 %s162, 8
          %s215 = scalar_lea.vmem [#allocation2], %s214
          %s216 = scalar_lea.sflag [#allocation3], %s162
          %s217 = smul.u32 8, 1
          %s218 = sshll.u32 %s217, 4
          %219 = dma.done %s216, %s218
          %v220 = vld [vmem:[%s215] sm:$0xff]
          %v221 = vld [vmem:[%s150] sm:$0x1]
          %v223 = vlaneseq
          %v224 = vshrl.u32 %v223, 7
          %v225 = vsub.s32 0, %v224
          %v226 = vrot.slane %v221, %v225
          %227 = vset.pattern.permute.xlu0 0
          %228 = vperm.xlu0 %227, %v226
          %v229 = vpop.permute.xlu0 %228
          %v231 = vmul.f32 %v220, %v229
          %232 = vst [vmem:[%s147] sm:$0xff] %v231
        $region56: #{tpu_custom_call.1} parent=27 // pred_fallthru
          _
        %s233 = sld [smem:[#allocation4 + %s18]]
        %p234 = scmp.eq.s32.totalorder %s233, 0
        // Predicated region
        $region57: #{tpu_custom_call.1} parent=27 // pred_check
          %p235 = pneg %p234
        $region58: #{tpu_custom_call.1} parent=27 // pred_check_branch
          %237 = sbr.rel (%p235) target = $region60
        $region59: #{tpu_custom_call.1} parent=27 // pred_region
          %238 = vst [vmem:[%s147] sm:$0xff] 0.0
        $region60: #{tpu_custom_call.1} parent=27 // pred_fallthru
          _
        %s239 = sand.u32 %s73, 1
        %s240 = scalar_lea.sflag [#allocation5], %s239
        %s241 = sand.u32 %s73, 1
        %s242 = smul.addr %s241, 8
        %s243 = scalar_lea.vmem [#allocation7], %s242
        // Predicated region
        $region61: #{tpu_custom_call.1} parent=27 // pred_check
          %p244 = pneg %p83
        $region62: #{tpu_custom_call.1} parent=27 // pred_check_branch
          %246 = sbr.rel (%p244) target = $region64
        $region63: #{tpu_custom_call.1} parent=27 // pred_region
          %s248 = ssub.s32 128, 128
          %249 = vsyncadd %s240, %s248
          %s250 = smul.addr %s18, 128
          %s251 = scalar_lea.hbm %s3, %s250
          %s253 = sshll.u32 %s243, 4
          %s254 = int_to_ptr.vmem [resolvable:$true] %s253
          %256 = dma.vmem_to_hbm [thread:$0]  %s254, 128, %s251, %s240
        $region64: #{tpu_custom_call.1} parent=27 // pred_fallthru
          _
      $region28: #{tpu_custom_call.1} parent=5 // pred_fallthru
        _
      %p257 = scmp.le.s32.totalorder 2, %s13
      // Predicated region
      $region65: #{tpu_custom_call.1} parent=5 // pred_check
        %p258 = pneg %p257
      $region66: #{tpu_custom_call.1} parent=5 // pred_check_branch
        %260 = sbr.rel (%p258) target = $region68
      $region67: #{tpu_custom_call.1} parent=5 // pred_region
        %s261 = ssub.s32 %s13, 2
        // Predicated region
        $region69: #{tpu_custom_call.1} parent=67 // pred_check
          %p262 = pneg %p89
        $region70: #{tpu_custom_call.1} parent=67 // pred_check_branch
          %264 = sbr.rel (%p262) target = $region72
        $region71: #{tpu_custom_call.1} parent=67 // pred_region
          %s265 = sand.u32 %s74, 1
          %s266 = scalar_lea.sflag [#allocation5], %s265
          %s267 = sand.u32 %s74, 1
          %s268 = smul.addr %s267, 8
          %s269 = scalar_lea.vmem [#allocation7], %s268
          %270 = dma.done %s266, 128
        $region72: #{tpu_custom_call.1} parent=67 // pred_fallthru
          _
      $region68: #{tpu_custom_call.1} parent=5 // pred_fallthru
        _
    $region6: #{tpu_custom_call.1} parent=1 // loop_footer
      %s17 = sadd.s32 1, %s13
    $region7: #{tpu_custom_call.1} parent=1 // loop_footer_branch
      %12 = sbr.rel target = $region3
    $region8: #{tpu_custom_call.1} parent=1 // loop_exit
      _
    %271 = vsyncpa [#allocation5], 1
    %s272 = scalar_lea.sflag [#allocation5], 1
    %273 = vsyncpa %s272, 1
    %274 = vsyncpa [#allocation6], 1
    %s275 = scalar_lea.sflag [#allocation6], 1
    %276 = vsyncpa %s275, 1
  %277 = vsyncmov [#allocation3]
  %s278 = vpop.sfrf %277
  %p279 = scmp.eq.s32.totalorder %s278, 0
  %p280 = pneg %p279
  %282 = shalt.err (%p280)
  %s283 = scalar_lea.sflag [#allocation3], 1
  %284 = vsyncmov %s283
  %s285 = vpop.sfrf %284
  %p286 = scmp.eq.s32.totalorder %s285, 0
  %p287 = pneg %p286
  %289 = shalt.err (%p287)

</llo_original>
